<compile_context>
chip_gen: v6e
topology: v6e:2x2x1
jax: 0.10.0
libtpu: 0.0.40
codegen_flags: <defaults>
</compile_context>

<pallas_src>
import functools

import jax
import jax.numpy as jnp
import numpy as np
from jax import lax
from jax.experimental import pallas as pl
from jax.experimental.pallas import tpu as pltpu


def _target_kernel(post_ref, box_ref, out_ref, *, conf, include_class,
                   include_box, tile_n, blocks_per_split, n_rows):
    p = pl.program_id(0)          # split index ('parallel' axis)
    i = pl.program_id(1)          # row-block index within the split ('arbitrary')

    # Zero the per-split scalar accumulator block on the first inner step.
    @pl.when(i == 0)
    def _init():
        out_ref[...] = jnp.zeros_like(out_ref)

    # Reduce in the native dtype; cast only the (tile_n, 1) result.
    # max-then-cast is bit-identical to cast-then-max for bf16 -> f32.
    row_max = jnp.max(post_ref[...], axis=-1, keepdims=True).astype(jnp.float32)
    sel0 = row_max >= jnp.float32(conf)

    def block_total(sel):
        t = jnp.float32(0.0)
        if include_class:
            t = t + jnp.sum(jnp.where(sel, row_max, 0.0))
        if include_box:
            boxes = box_ref[...].astype(jnp.float32)          # (tile_n, 4)
            # Whole-block masked reduce: no per-row cross-lane box sum.
            t = t + jnp.sum(jnp.where(sel, boxes, 0.0))
        return t

    row_start = (p * blocks_per_split + i) * tile_n
    is_full = row_start + tile_n <= n_rows

    # Fast path: full block — no iota / validity mask needed.
    @pl.when(is_full)
    def _full():
        out_ref[...] += block_total(sel0)

    # Ragged tail: mask rows beyond n_rows (padded rows may hold garbage,
    # so the validity mask must be ANDed in before the select).
    @pl.when(jnp.logical_not(is_full))
    def _ragged():
        rid = lax.broadcasted_iota(jnp.int32, (tile_n, 1), 0)
        valid = rid < (n_rows - row_start)
        out_ref[...] += block_total(jnp.logical_and(sel0, valid))


def _choose_tile_n(requested, n_rows, n_classes, post_itemsize, box_itemsize,
                   vmem_budget_bytes):
    """Largest row tile that fits the (double-buffered, lane-padded) VMEM budget."""
    lanes_post = ((n_classes + 127) // 128) * 128
    # post block + boxes block (boxes lane-pad to 128), each double-buffered.
    bytes_per_row = 2 * (lanes_post * post_itemsize + 128 * box_itemsize)
    vmem_rows = max(32, vmem_budget_bytes // bytes_per_row)
    tile = min(int(requested), int(vmem_rows))
    if tile >= n_rows:
        return n_rows                      # single full-extent block (always legal)
    # 32-row granularity satisfies sublane packing for f32 (8), bf16 (16), int8 (32).
    return max(32, (tile // 32) * 32)


def yolov8_target_forward(post_result, pre_post_boxes, *, output_type="all",
                          conf=0.25, ratio=None, tile_n=8192, num_splits=1):
    """JAX/Pallas equivalent of yolov8_target(output_type, conf, ratio).forward(data)."""
    del ratio  # unused by the PyTorch forward()
    assert post_result.ndim == 2, "post_result must be [N, num_classes]"
    assert pre_post_boxes.ndim == 2 and pre_post_boxes.shape[1] >= 4
    n_rows, n_classes = post_result.shape
    assert pre_post_boxes.shape[0] == n_rows and n_rows >= 1

    include_class = output_type in ("class", "all")
    include_box = output_type in ("box", "all")
    if not (include_class or include_box):
        return jnp.float32(0.0)

    # Avoid a wrapper-side copy when boxes are already (N, 4).
    boxes = pre_post_boxes if pre_post_boxes.shape[1] == 4 else pre_post_boxes[:, :4]

    # Generation-safe tile choice: ~32 MiB of double-buffered tile VMEM keeps
    # comfortable headroom under v7x's 64 MiB; v5e/v6e (128 MiB) are fine too.
    vmem_budget = 32 * 1024 * 1024
    tile_n = _choose_tile_n(tile_n, n_rows, n_classes,
                            post_result.dtype.itemsize, boxes.dtype.itemsize,
                            vmem_budget)

    num_blocks = pl.cdiv(n_rows, tile_n)

    # Only honor a multi-way split (v7x megacore) when it divides the block
    # count exactly — avoids clamped duplicate blocks that DMA+compute a
    # fully-masked tile and unbalance the two TensorCores.
    num_splits = max(1, min(int(num_splits), num_blocks))
    while num_splits > 1 and num_blocks % num_splits != 0:
        num_splits -= 1
    blocks_per_split = num_blocks // num_splits

    def row_block_index_map(p, i):
        return (p * blocks_per_split + i, 0)

    kernel = functools.partial(
        _target_kernel,
        conf=float(conf),
        include_class=include_class,
        include_box=include_box,
        tile_n=tile_n,
        blocks_per_split=blocks_per_split,
        n_rows=n_rows,
    )

    bytes_accessed = (n_rows * n_classes * post_result.dtype.itemsize
                      + n_rows * 4 * boxes.dtype.itemsize
                      + num_splits * 4)

    out = pl.pallas_call(
        kernel,
        out_shape=jax.ShapeDtypeStruct((num_splits, 1, 1), jnp.float32),
        grid_spec=pltpu.PrefetchScalarGridSpec(
            num_scalar_prefetch=0,
            grid=(num_splits, blocks_per_split),
            in_specs=[
                pl.BlockSpec((tile_n, n_classes), row_block_index_map),
                pl.BlockSpec((tile_n, 4), row_block_index_map),
            ],
            out_specs=pl.BlockSpec((1, 1, 1), lambda p, i: (p, 0, 0)),
        ),
        compiler_params=pltpu.CompilerParams(
            dimension_semantics=("parallel", "arbitrary"),
            vmem_limit_bytes=48 * 1024 * 1024,
        ),
        cost_estimate=pl.CostEstimate(
            flops=n_rows * (n_classes + 8),
            transcendentals=0,
            bytes_accessed=bytes_accessed,
        ),
    )(post_result, boxes)

    # TODO(synk): accepting a producer-fused (C, N) layout would make the class
    # max lane-dense (VPU instead of XLU) — only worthwhile if the transpose
    # fuses upstream, so it is not done here.
    return jnp.sum(out[:, 0, 0])


def _reference(post_result, pre_post_boxes, output_type, conf):
    # Direct numpy transcription of the PyTorch loop.
    post = np.asarray(post_result, dtype=np.float32)
    boxes = np.asarray(pre_post_boxes, dtype=np.float32)
    result = []
    for i in range(post.shape[0]):
        if float(post[i].max()) >= conf:
            if output_type in ("class", "all"):
                result.append(float(post[i].max()))
            if output_type in ("box", "all"):
                for j in range(4):
                    result.append(float(boxes[i, j]))
    return float(sum(result))


if __name__ == "__main__":
    key = jax.random.PRNGKey(0)

    # Case 1: tiny demo size, all three output types (single full-extent block).
    k1, k2, key = jax.random.split(key, 3)
    num_dets, num_classes = 8, 16
    post_small = jax.random.uniform(k1, (num_dets, num_classes), dtype=jnp.float32)
    boxes_small = jax.random.uniform(k2, (num_dets, 4), dtype=jnp.float32,
                                     minval=0.0, maxval=16.0)
    for output_type in ("all", "class", "box"):
        out = yolov8_target_forward(post_small, boxes_small,
                                    output_type=output_type, conf=0.6)
        out = jax.block_until_ready(out)
        ref = _reference(post_small, boxes_small, output_type, 0.6)
        np.testing.assert_allclose(np.asarray(out), ref, rtol=1e-5, atol=1e-5)

    # Case 2: multi-block with ragged tail, bf16 in-kernel native-dtype reduce
    # (odd block count -> the 2-way split request safely falls back to 1).
    k3, k4, key = jax.random.split(key, 3)
    n, c = 300, 80
    post_bf16 = jax.random.uniform(k3, (n, c), dtype=jnp.float32).astype(jnp.bfloat16)
    boxes_f32 = jax.random.uniform(k4, (n, 4), dtype=jnp.float32,
                                   minval=0.0, maxval=16.0)
    out = yolov8_target_forward(post_bf16, boxes_f32, output_type="all",
                                conf=0.5, tile_n=128, num_splits=2)
    out = jax.block_until_ready(out)
    ref = _reference(jnp.asarray(post_bf16, jnp.float32), boxes_f32, "all", 0.5)
    np.testing.assert_allclose(np.asarray(out), ref, rtol=1e-4, atol=1e-4)

    # Case 3: exact 2-way split (4 blocks), non-128-aligned class count.
    k5, k6, key = jax.random.split(key, 3)
    n, c = 512, 33
    post_f32 = jax.random.uniform(k5, (n, c), dtype=jnp.float32)
    boxes2 = jax.random.uniform(k6, (n, 4), dtype=jnp.float32,
                                minval=0.0, maxval=16.0)
    out = yolov8_target_forward(post_f32, boxes2, output_type="all",
                                conf=0.9, tile_n=128, num_splits=2)
    out = jax.block_until_ready(out)
    ref = _reference(post_f32, boxes2, "all", 0.9)
    np.testing.assert_allclose(np.asarray(out), ref, rtol=1e-5, atol=1e-4)

    print("KERNEL_OK")
</pallas_src>

<mosaic_0001>
module attributes {stable_mosaic.version = 11 : i64} {
  func.func @_target_kernel(%arg0: i32, %arg1: i32, %arg2: memref<8x16xf32, #tpu.memory_space<vmem>>, %arg3: memref<8x4xf32, #tpu.memory_space<vmem>>, %arg4: memref<1x1x1xf32, #tpu.memory_space<vmem>>) attributes {dimension_semantics = [#tpu.dimension_semantics<parallel>, #tpu.dimension_semantics<arbitrary>], iteration_bounds = array<i64: 1, 1>, scalar_prefetch = 0 : i64, scratch_operands = 0 : i64, tpu.core_type = #tpu.core_type<tc>, window_params = [{transform_indices = @transform_0, window_bounds = array<i64: 8, 16>}, {transform_indices = @transform_1, window_bounds = array<i64: 8, 4>}, {transform_indices = @transform_2, window_bounds = array<i64: 1, 1, 1>}]} {
    %c0_i32 = arith.constant 0 : i32
    %0 = arith.cmpi eq, %arg1, %c0_i32 : i32
    %1 = arith.extui %0 : i1 to i32
    %c0_i32_0 = arith.constant 0 : i32
    %2 = arith.cmpi ne, %1, %c0_i32_0 : i32
    scf.if %2 {
      %cst_7 = arith.constant 0.000000e+00 : f32
      %18 = vector.broadcast %cst_7 : f32 to vector<1x1x1xf32>
      %c0_8 = arith.constant 0 : index
      %c0_9 = arith.constant 0 : index
      %c0_10 = arith.constant 0 : index
      %19 = vector.load %arg4[%c0_8, %c0_9, %c0_10] : memref<1x1x1xf32, #tpu.memory_space<vmem>>, vector<1x1x1xf32>
      tpu.vector_store %arg4[%c0_8, %c0_9, %c0_10], %18 {strides = array<i32>} : memref<1x1x1xf32, #tpu.memory_space<vmem>>, vector<1x1x1xf32>,
    } else {
    }
    %c0 = arith.constant 0 : index
    %c0_1 = arith.constant 0 : index
    %3 = vector.load %arg2[%c0, %c0_1] : memref<8x16xf32, #tpu.memory_space<vmem>>, vector<8x16xf32>
    %cst = arith.constant dense<0xFF800000> : vector<8xf32>
    %4 = vector.multi_reduction <maximumf>, %3, %cst [1] : vector<8x16xf32> to vector<8xf32>
    %5 = vector.shape_cast %4 : vector<8xf32> to vector<8x1xf32>
    %cst_2 = arith.constant 6.000000e-01 : f32
    %6 = vector.broadcast %cst_2 : f32 to vector<8x1xf32>
    %7 = arith.cmpf oge, %5, %6 : vector<8x1xf32>
    %c1_i32 = arith.constant 1 : i32
    %8 = arith.muli %arg0, %c1_i32 : i32
    %9 = arith.addi %8, %arg1 : i32
    %c8_i32 = arith.constant 8 : i32
    %10 = arith.muli %9, %c8_i32 : i32
    %c8_i32_3 = arith.constant 8 : i32
    %11 = arith.addi %10, %c8_i32_3 : i32
    %c8_i32_4 = arith.constant 8 : i32
    %12 = arith.cmpi sle, %11, %c8_i32_4 : i32
    %13 = arith.extui %12 : i1 to i32
    %c0_i32_5 = arith.constant 0 : i32
    %14 = arith.cmpi ne, %13, %c0_i32_5 : i32
    scf.if %14 {
      %c0_7 = arith.constant 0 : index
      %c0_8 = arith.constant 0 : index
      %c0_9 = arith.constant 0 : index
      %18 = vector.load %arg4[%c0_7, %c0_8, %c0_9] : memref<1x1x1xf32, #tpu.memory_space<vmem>>, vector<1x1x1xf32>
      %cst_10 = arith.constant 0.000000e+00 : f32
      %19 = vector.broadcast %cst_10 : f32 to vector<8x1xf32>
      %20 = arith.select %7, %5, %19 : vector<8x1xi1>, vector<8x1xf32>
      %21 = vector.shape_cast %20 : vector<8x1xf32> to vector<1x8x1xf32>
      %cst_11 = arith.constant dense<0.000000e+00> : vector<1xf32>
      %22 = vector.multi_reduction <add>, %21, %cst_11 [1, 2] : vector<1x8x1xf32> to vector<1xf32>
      %23 = vector.shape_cast %22 : vector<1xf32> to vector<1x1x1xf32>
      %24 = vector.extract %23[0, 0, 0] : f32 from vector<1x1x1xf32>
      %cst_12 = arith.constant 0.000000e+00 : f32
      %25 = arith.addf %cst_12, %24 : f32
      %c0_13 = arith.constant 0 : index
      %c0_14 = arith.constant 0 : index
      %26 = vector.load %arg3[%c0_13, %c0_14] : memref<8x4xf32, #tpu.memory_space<vmem>>, vector<8x4xf32>
      %cst_15 = arith.constant 0.000000e+00 : f32
      %27 = vector.shape_cast %7 : vector<8x1xi1> to vector<8x1xi1>
      %28 = vector.broadcast %27 : vector<8x1xi1> to vector<8x4xi1>
      %29 = vector.broadcast %cst_15 : f32 to vector<8x4xf32>
      %30 = arith.select %28, %26, %29 : vector<8x4xi1>, vector<8x4xf32>
      %31 = vector.shape_cast %30 : vector<8x4xf32> to vector<1x8x4xf32>
      %cst_16 = arith.constant dense<0.000000e+00> : vector<1xf32>
      %32 = vector.multi_reduction <add>, %31, %cst_16 [1, 2] : vector<1x8x4xf32> to vector<1xf32>
      %33 = vector.shape_cast %32 : vector<1xf32> to vector<1x1x1xf32>
      %34 = vector.extract %33[0, 0, 0] : f32 from vector<1x1x1xf32>
      %35 = arith.addf %25, %34 : f32
      %36 = vector.broadcast %35 : f32 to vector<1x1x1xf32>
      %37 = arith.addf %18, %36 : vector<1x1x1xf32>
      %c0_17 = arith.constant 0 : index
      %c0_18 = arith.constant 0 : index
      %c0_19 = arith.constant 0 : index
      %38 = vector.load %arg4[%c0_17, %c0_18, %c0_19] : memref<1x1x1xf32, #tpu.memory_space<vmem>>, vector<1x1x1xf32>
      tpu.vector_store %arg4[%c0_17, %c0_18, %c0_19], %37 {strides = array<i32>} : memref<1x1x1xf32, #tpu.memory_space<vmem>>, vector<1x1x1xf32>,
    } else {
    }
    %true = arith.constant true
    %15 = arith.xori %12, %true : i1
    %16 = arith.extui %15 : i1 to i32
    %c0_i32_6 = arith.constant 0 : i32
    %17 = arith.cmpi ne, %16, %c0_i32_6 : i32
    scf.if %17 {
      %18 = tpu.iota {dimensions = array<i32: 0>} : vector<8x1xi32>
      %c8_i32_7 = arith.constant 8 : i32
      %19 = arith.subi %c8_i32_7, %10 : i32
      %20 = vector.broadcast %19 : i32 to vector<8x1xi32>
      %21 = arith.cmpi slt, %18, %20 : vector<8x1xi32>
      %c0_8 = arith.constant 0 : index
      %c0_9 = arith.constant 0 : index
      %c0_10 = arith.constant 0 : index
      %22 = vector.load %arg4[%c0_8, %c0_9, %c0_10] : memref<1x1x1xf32, #tpu.memory_space<vmem>>, vector<1x1x1xf32>
      %23 = arith.andi %7, %21 : vector<8x1xi1>
      %cst_11 = arith.constant 0.000000e+00 : f32
      %24 = vector.broadcast %cst_11 : f32 to vector<8x1xf32>
      %25 = arith.select %23, %5, %24 : vector<8x1xi1>, vector<8x1xf32>
      %26 = vector.shape_cast %25 : vector<8x1xf32> to vector<1x8x1xf32>
      %cst_12 = arith.constant dense<0.000000e+00> : vector<1xf32>
      %27 = vector.multi_reduction <add>, %26, %cst_12 [1, 2] : vector<1x8x1xf32> to vector<1xf32>
      %28 = vector.shape_cast %27 : vector<1xf32> to vector<1x1x1xf32>
      %29 = vector.extract %28[0, 0, 0] : f32 from vector<1x1x1xf32>
      %cst_13 = arith.constant 0.000000e+00 : f32
      %30 = arith.addf %cst_13, %29 : f32
      %c0_14 = arith.constant 0 : index
      %c0_15 = arith.constant 0 : index
      %31 = vector.load %arg3[%c0_14, %c0_15] : memref<8x4xf32, #tpu.memory_space<vmem>>, vector<8x4xf32>
      %cst_16 = arith.constant 0.000000e+00 : f32
      %32 = vector.shape_cast %23 : vector<8x1xi1> to vector<8x1xi1>
      %33 = vector.broadcast %32 : vector<8x1xi1> to vector<8x4xi1>
      %34 = vector.broadcast %cst_16 : f32 to vector<8x4xf32>
      %35 = arith.select %33, %31, %34 : vector<8x4xi1>, vector<8x4xf32>
      %36 = vector.shape_cast %35 : vector<8x4xf32> to vector<1x8x4xf32>
      %cst_17 = arith.constant dense<0.000000e+00> : vector<1xf32>
      %37 = vector.multi_reduction <add>, %36, %cst_17 [1, 2] : vector<1x8x4xf32> to vector<1xf32>
      %38 = vector.shape_cast %37 : vector<1xf32> to vector<1x1x1xf32>
      %39 = vector.extract %38[0, 0, 0] : f32 from vector<1x1x1xf32>
      %40 = arith.addf %30, %39 : f32
      %41 = vector.broadcast %40 : f32 to vector<1x1x1xf32>
      %42 = arith.addf %22, %41 : vector<1x1x1xf32>
      %c0_18 = arith.constant 0 : index
      %c0_19 = arith.constant 0 : index
      %c0_20 = arith.constant 0 : index
      %43 = vector.load %arg4[%c0_18, %c0_19, %c0_20] : memref<1x1x1xf32, #tpu.memory_space<vmem>>, vector<1x1x1xf32>
      tpu.vector_store %arg4[%c0_18, %c0_19, %c0_20], %42 {strides = array<i32>} : memref<1x1x1xf32, #tpu.memory_space<vmem>>, vector<1x1x1xf32>,
    } else {
    }
    return
  }
  func.func @transform_0(%arg0: i32, %arg1: i32) -> (i32, i32) {
    %c1_i32 = arith.constant 1 : i32
    %0 = arith.muli %arg0, %c1_i32 : i32
    %1 = arith.addi %0, %arg1 : i32
    %c0_i32 = arith.constant 0 : i32
    %c0_i32_0 = arith.constant 0 : i32
    return %1, %c0_i32 : i32, i32
  }
  func.func @transform_1(%arg0: i32, %arg1: i32) -> (i32, i32) {
    %c1_i32 = arith.constant 1 : i32
    %0 = arith.muli %arg0, %c1_i32 : i32
    %1 = arith.addi %0, %arg1 : i32
    %c0_i32 = arith.constant 0 : i32
    %c0_i32_0 = arith.constant 0 : i32
    return %1, %c0_i32 : i32, i32
  }
  func.func @transform_2(%arg0: i32, %arg1: i32) -> (i32, i32, i32) {
    %c0_i32 = arith.constant 0 : i32
    %c0_i32_0 = arith.constant 0 : i32
    %c0_i32_1 = arith.constant 0 : i32
    return %arg0, %c0_i32, %c0_i32_0 : i32, i32, i32
  }
}

</mosaic_0001>

<llo_original>
// kernel: tpu_custom_call.1
$region0: #{tpu_custom_call.1}
  #allocation0 [shape = 'u32[]', space=smem, size = 0x4, offset = 0x4, fixed_abs, tag = 'smem constant byte address 0x4 - core index']
  #allocation1 [shape = 'u32[144,128]{1,0:T(1,128)}', space=vmem, size = 0x12000, scoped, tag = 'internal scratch']
  %s0 = inlined_call_operand.vmem [shape: f32[8,16], index: 0, kind: input, shape index: {}]
  %s1 = inlined_call_operand.vmem [shape: f32[8,4], index: 1, kind: input, shape index: {}]
  %s2 = inlined_call_operand.hbm [shape: f32[1,1,1], index: 2, kind: output, shape index: {}]
  %s3 = sld [smem:[#allocation0]]
  $region30: #{tpu_custom_call.1} parent=0
    _
  %s5 = ssub.s32 1, %s3
  %s6 = scalar_select 0, %s5, %s3
  $region1: #{tpu_custom_call.1} parent=0
    #allocation2 [shape = 'u8[512]{0}', space=vmem, size = 0x400, scoped, tag = 'output window, operand 0, single buffered']
    #allocation3 [shape = 's32[1]{0}', space=sflag, size = 0x4, scoped, tag = 'scoped memory for tpu_custom_call.1']
    %7 = vsyncpa [#allocation3], 0
    // Predicated region
    $region2: #{tpu_custom_call.1} parent=1 // pred_check
      _
    $region3: #{tpu_custom_call.1} parent=1 // pred_check_branch
      %9 = sbr.rel (0) target = $region5
    $region4: #{tpu_custom_call.1} parent=1 // pred_region
      %s10 = sadd.s32 0, 0
      %p11 = scmp.lt.s32.totalorder %s10, 0
      %s12 = scalar_select %p11, %s10, 0
      %s13 = smul.addr %s12, 8
      %s14 = scalar_lea.vmem %s0, %s13
      %s15 = sadd.s32 0, 0
    $region5: #{tpu_custom_call.1} parent=1 // pred_fallthru
      _
    // Predicated region
    $region6: #{tpu_custom_call.1} parent=1 // pred_check
      _
    $region7: #{tpu_custom_call.1} parent=1 // pred_check_branch
      %17 = sbr.rel (0) target = $region9
    $region8: #{tpu_custom_call.1} parent=1 // pred_region
      %s18 = sadd.s32 0, 0
      %p19 = scmp.lt.s32.totalorder %s18, 0
      %s20 = scalar_select %p19, %s18, 0
      %s21 = smul.addr %s20, 8
      %s22 = scalar_lea.vmem %s1, %s21
      %s23 = sadd.s32 0, 0
    $region9: #{tpu_custom_call.1} parent=1 // pred_fallthru
      _
    %s24 = sadd.s32 0, 0
    %p25 = scmp.lt.s32.totalorder %s24, 0
    %s26 = scalar_select %p25, %s24, 0
    %s27 = smul.addr %s26, 8
    %s28 = scalar_lea.vmem %s0, %s27
    %s29 = sadd.s32 0, 0
    %p30 = scmp.lt.s32.totalorder %s29, 0
    %s31 = scalar_select %p30, %s29, 0
    %s32 = smul.addr %s31, 8
    %s33 = scalar_lea.vmem %s1, %s32
    %s34 = sadd.s32 0, 0
    %p35 = scmp.lt.s32.totalorder %s34, 0
    %s36 = scalar_select %p35, %s34, 0
    %s37 = smul.addr %s36, 8
    %s38 = scalar_lea.vmem %s0, %s37
    %s39 = sadd.s32 0, 0
    %s40 = sadd.s32 0, 0
    %p41 = scmp.lt.s32.totalorder %s40, 0
    %s42 = scalar_select %p41, %s40, 0
    %s43 = smul.addr %s42, 8
    %s44 = scalar_lea.vmem %s1, %s43
    %s45 = sadd.s32 0, 0
    %p46 = scmp.eq.s32.totalorder 0, 0
    // Predicated region
    $region10: #{tpu_custom_call.1} parent=1 // pred_check
      %p47 = pneg %p46
    $region11: #{tpu_custom_call.1} parent=1 // pred_check_branch
      %49 = sbr.rel (%p47) target = $region13
    $region12: #{tpu_custom_call.1} parent=1 // pred_region
      %vm50 = vcmask 0
      %51 = vst.msk [vmem:[#allocation2] sm:$0x1] %vm50, 0.0
    $region13: #{tpu_custom_call.1} parent=1 // pred_fallthru
      _
    %v52 = vld [vmem:[%s38] sm:$0xff]
    %vm53 = vcmask 130048
    %v54 = vsel %vm53, %v52, -inf
    %55 = vmax.xlane.f32.xlu0 %v54
    %v56 = vpop.xlane.xlu0 %55
    %vm57 = vcmp.ge.f32.partialorder %v56, 0.6
    %s58 = sadd.s32 0, 0
    %s59 = smul.u32 %s58, 8
    %s60 = sadd.s32 %s59, 8
    %p61 = scmp.le.s32.totalorder %s60, 8
    // Predicated region
    $region14: #{tpu_custom_call.1} parent=1 // pred_check
      %p62 = pneg %p61
    $region15: #{tpu_custom_call.1} parent=1 // pred_check_branch
      %64 = sbr.rel (%p62) target = $region17
    $region16: #{tpu_custom_call.1} parent=1 // pred_region
      %v65 = vld [vmem:[#allocation2] sm:$0x1]
      %v66 = vsel %vm57, %v56, 0.0
      %vm67 = vcmask 7168
      %v68 = vsel %vm67, %v66, 0.0
      %69 = vadd.xlane.f32.xlu0 %v68
      %v70 = vpop.xlane.xlu0 %69
      %v71 = vrot.slane %v70, 4
      %v72 = vadd.f32 %v70, %v71
      %v73 = vrot.slane %v72, 2
      %v74 = vadd.f32 %v72, %v73
      %v75 = vrot.slane %v74, 1
      %v76 = vadd.f32 %v74, %v75
      %s77 = vtos %v76
      %s78 = sadd.f32 %s77, 0.0
      %v79 = vld [vmem:[%s44] sm:$0xff]
      %v80 = vsel %vm57, 1, 0
      %vm81 = vcmp.eq.s32.totalorder %v80, 1
      %v82 = vsel %vm81, %v79, 0.0
      %vm83 = vcmask 31744
      %v84 = vsel %vm83, %v82, 0.0
      %85 = vadd.xlane.f32.xlu0 %v84
      %v86 = vpop.xlane.xlu0 %85
      %v87 = vrot.slane %v86, 4
      %v88 = vadd.f32 %v86, %v87
      %v89 = vrot.slane %v88, 2
      %v90 = vadd.f32 %v88, %v89
      %v91 = vrot.slane %v90, 1
      %v92 = vadd.f32 %v90, %v91
      %s93 = vtos %v92
      %s94 = sadd.f32 %s78, %s93
      %v95 = vstv %s94
      %v96 = vadd.f32 %v65, %v95
      %vm97 = vcmask 0
      %98 = vst.msk [vmem:[#allocation2] sm:$0x1] %vm97, %v96
    $region17: #{tpu_custom_call.1} parent=1 // pred_fallthru
      _
    %p99 = scmp.gt.s32.totalorder %s60, 8
    // Predicated region
    $region18: #{tpu_custom_call.1} parent=1 // pred_check
      %p100 = pneg %p99
    $region19: #{tpu_custom_call.1} parent=1 // pred_check_branch
      %102 = sbr.rel (%p100) target = $region21
    $region20: #{tpu_custom_call.1} parent=1 // pred_region
      %v103 = vlaneseq
      %v104 = vshrl.u32 %v103, 7
      %s105 = ssub.s32 8, %s59
      %v106 = vstv %s105
      %vm107 = vcmp.lt.s32.totalorder %v104, %v106
      %v108 = vld [vmem:[#allocation2] sm:$0x1]
      %vm109 = vmand %vm57, %vm107
      %v110 = vsel %vm109, %v56, 0.0
      %vm111 = vcmask 7168
      %v112 = vsel %vm111, %v110, 0.0
      %113 = vadd.xlane.f32.xlu0 %v112
      %v114 = vpop.xlane.xlu0 %113
      %v115 = vrot.slane %v114, 4
      %v116 = vadd.f32 %v114, %v115
      %v117 = vrot.slane %v116, 2
      %v118 = vadd.f32 %v116, %v117
      %v119 = vrot.slane %v118, 1
      %v120 = vadd.f32 %v118, %v119
      %s121 = vtos %v120
      %s122 = sadd.f32 %s121, 0.0
      %v123 = vld [vmem:[%s44] sm:$0xff]
      %v124 = vsel %vm109, 1, 0
      %vm125 = vcmp.eq.s32.totalorder %v124, 1
      %v126 = vsel %vm125, %v123, 0.0
      %vm127 = vcmask 31744
      %v128 = vsel %vm127, %v126, 0.0
      %129 = vadd.xlane.f32.xlu0 %v128
      %v130 = vpop.xlane.xlu0 %129
      %v131 = vrot.slane %v130, 4
      %v132 = vadd.f32 %v130, %v131
      %v133 = vrot.slane %v132, 2
      %v134 = vadd.f32 %v132, %v133
      %v135 = vrot.slane %v134, 1
      %v136 = vadd.f32 %v134, %v135
      %s137 = vtos %v136
      %s138 = sadd.f32 %s122, %s137
      %v139 = vstv %s138
      %v140 = vadd.f32 %v108, %v139
      %vm141 = vcmask 0
      %142 = vst.msk [vmem:[#allocation2] sm:$0x1] %vm141, %v140
    $region21: #{tpu_custom_call.1} parent=1 // pred_fallthru
      _
    // Predicated region
    $region22: #{tpu_custom_call.1} parent=1 // pred_check
      _
    $region23: #{tpu_custom_call.1} parent=1 // pred_check_branch
      %144 = sbr.rel (0) target = $region25
    $region24: #{tpu_custom_call.1} parent=1 // pred_region
      %s146 = ssub.s32 16, 16
      %147 = vsyncadd [#allocation3], %s146
      %s149 = sshll.u32 [#allocation2], 4
      %s150 = int_to_ptr.vmem [resolvable:$true] %s149
      %152 = dma.vmem_to_hbm [thread:$0]  %s150, 16, %s2, [#allocation3]
    $region25: #{tpu_custom_call.1} parent=1 // pred_fallthru
      _
    // Predicated region
    $region26: #{tpu_custom_call.1} parent=1 // pred_check
      _
    $region27: #{tpu_custom_call.1} parent=1 // pred_check_branch
      %154 = sbr.rel (0) target = $region29
    $region28: #{tpu_custom_call.1} parent=1 // pred_region
      %155 = dma.done [#allocation3], 16
    $region29: #{tpu_custom_call.1} parent=1 // pred_fallthru
      _
    %156 = vsyncpa [#allocation3], 1

</llo_original>
